<compile_context>
chip_gen: v5e
topology: v5e:2x2
jax: 0.10.0
libtpu: 0.0.40
codegen_flags: <defaults>
</compile_context>

<pallas_src>
import functools

import jax
import jax.numpy as jnp
from jax.experimental import pallas as pl
from jax.experimental.pallas import tpu as pltpu

LANE = 128


def _round_up(x: int, m: int) -> int:
    return (x + m - 1) // m * m


def _vmem_capacity_bytes() -> int:
    try:
        return int(pltpu.get_tpu_info().vmem_capacity_bytes)
    except Exception:
        return 64 * 1024 * 1024  # conservative (v7x per-TC size)


def _row_align(dtype) -> int:
    # 8 sublanes, and sub-32-bit dtypes pack 2x/4x rows per sublane.
    return 8 * (4 // jnp.dtype(dtype).itemsize)


def _pick_tile(dim: int, cap: int = 512) -> int:
    """Largest multiple of 128 that divides `dim` and is <= cap (dim is 128-aligned)."""
    best = LANE
    t = LANE
    while t <= min(cap, dim):
        if dim % t == 0:
            best = t
        t += LANE
    return best


# ----------------------------------------------------------------------------
# Fused whole-MLP kernel: one row tile per grid step, all weights VMEM-resident.
# ----------------------------------------------------------------------------
def _fused_mlp_kernel(x_ref, *refs, num_layers: int, compute_dtype):
    o_ref = refs[-1]
    h = x_ref[...].astype(compute_dtype)
    for l in range(num_layers):
        w = refs[2 * l][...]
        b = refs[2 * l + 1][...]
        acc = jnp.dot(h, w, preferred_element_type=jnp.float32) + b  # f32 bias-add
        if l != num_layers - 1:
            # ReLU + requantize to the MXU input dtype fused in a single VPU pass.
            h = jnp.maximum(acc, 0.0).astype(compute_dtype)
        else:
            h = acc
    o_ref[...] = h.astype(o_ref.dtype)


def _fused_mlp_forward(x_in, w_ps, b_ps, dims_p, out_dtype, *, tm_eff,
                       compute_dtype, vmem_limit, buffered=True):
    num_layers = len(w_ps)
    n_eff, din_p = x_in.shape
    dout_p = dims_p[-1]

    def const_spec(shape):
        if buffered:
            return pl.BlockSpec(shape, lambda i: (0, 0),
                                pipeline_mode=pl.Buffered(1))
        return pl.BlockSpec(shape, lambda i: (0, 0))

    in_specs = [pl.BlockSpec((tm_eff, din_p), lambda i: (i, 0))]
    for l in range(num_layers):
        in_specs.append(const_spec((dims_p[l], dims_p[l + 1])))
        in_specs.append(const_spec((1, dims_p[l + 1])))
    out_spec = pl.BlockSpec((tm_eff, dout_p), lambda i: (i, 0))

    flops = 2 * n_eff * sum(dims_p[l] * dims_p[l + 1] for l in range(num_layers))
    bytes_accessed = int(
        x_in.size * jnp.dtype(x_in.dtype).itemsize
        + sum(w.size * jnp.dtype(w.dtype).itemsize for w in w_ps)
        + sum(b.size * 4 for b in b_ps)
        + n_eff * dout_p * jnp.dtype(out_dtype).itemsize)

    kernel = functools.partial(_fused_mlp_kernel, num_layers=num_layers,
                               compute_dtype=compute_dtype)
    flat_wb = [t for pair in zip(w_ps, b_ps) for t in pair]

    return pl.pallas_call(
        kernel,
        out_shape=jax.ShapeDtypeStruct((n_eff, dout_p), out_dtype),
        grid_spec=pltpu.PrefetchScalarGridSpec(
            num_scalar_prefetch=0,
            grid=(pl.cdiv(n_eff, tm_eff),),
            in_specs=in_specs,
            out_specs=out_spec,
        ),
        compiler_params=pltpu.CompilerParams(
            dimension_semantics=("parallel",),  # row-tile axis shards across TCs
            vmem_limit_bytes=int(vmem_limit)),
        cost_estimate=pl.CostEstimate(flops=int(flops), transcendentals=0,
                                      bytes_accessed=bytes_accessed),
    )(x_in, *flat_wb)


# ----------------------------------------------------------------------------
# Layer-wise K/N-tiled fallback (weights too large to stay fully VMEM-resident).
# ----------------------------------------------------------------------------
def _tiled_linear_kernel(x_ref, w_ref, b_ref, o_ref, acc_ref, *, apply_relu: bool):
    k = pl.program_id(2)

    @pl.when(k == 0)
    def _():
        acc_ref[...] = jnp.zeros_like(acc_ref)

    acc_ref[...] += jnp.dot(x_ref[...], w_ref[...],
                            preferred_element_type=jnp.float32)

    @pl.when(k == pl.num_programs(2) - 1)
    def _():
        y = acc_ref[...] + b_ref[...]
        if apply_relu:
            y = jnp.maximum(y, 0.0)
        o_ref[...] = y.astype(o_ref.dtype)


def _tiled_linear(x, w_p, b_p, *, out_dtype, apply_relu, tm, vmem_cap):
    n, din_p = x.shape
    dout_p = w_p.shape[1]
    align = _row_align(x.dtype)
    tm_eff = max(align, min(_round_up(tm, align), _round_up(n, align)))
    tk = _pick_tile(din_p, 512)
    tn = _pick_tile(dout_p, 512)

    x_item = jnp.dtype(x.dtype).itemsize
    w_item = jnp.dtype(w_p.dtype).itemsize
    o_item = jnp.dtype(out_dtype).itemsize
    vmem_need = (2 * tm_eff * tk * x_item + 2 * tk * tn * w_item + 2 * 8 * tn * 4
                 + 2 * tm_eff * tn * o_item + tm_eff * tn * 4)
    vmem_limit = int(min(max(2 * vmem_need, 32 * 1024 * 1024),
                         int(0.9 * vmem_cap)))

    kernel = functools.partial(_tiled_linear_kernel, apply_relu=apply_relu)
    return pl.pallas_call(
        kernel,
        out_shape=jax.ShapeDtypeStruct((n, dout_p), out_dtype),
        grid_spec=pltpu.PrefetchScalarGridSpec(
            num_scalar_prefetch=0,
            grid=(pl.cdiv(n, tm_eff), dout_p // tn, din_p // tk),
            in_specs=[pl.BlockSpec((tm_eff, tk), lambda i, j, k: (i, k)),
                      pl.BlockSpec((tk, tn), lambda i, j, k: (k, j)),
                      pl.BlockSpec((1, tn), lambda i, j, k: (0, j))],
            out_specs=pl.BlockSpec((tm_eff, tn), lambda i, j, k: (i, j)),
            scratch_shapes=[pltpu.VMEM((tm_eff, tn), jnp.float32)]),
        compiler_params=pltpu.CompilerParams(
            dimension_semantics=("parallel", "parallel", "arbitrary"),
            vmem_limit_bytes=vmem_limit),
        cost_estimate=pl.CostEstimate(
            flops=int(2 * n * din_p * dout_p), transcendentals=0,
            bytes_accessed=int(n * din_p * x_item + din_p * dout_p * w_item
                               + dout_p * 4 + n * dout_p * o_item)),
    )(x, w_p, b_p)


# ----------------------------------------------------------------------------
# Module wrapper (mirrors the PyTorch MLP, eval mode, norm_type='none').
# ----------------------------------------------------------------------------
class MLPPallas:
    def __init__(self, num_layers, input_dim, hidden_dim, output_dim,
                 dropout_ratio=0.0, norm_type="none", key=None,
                 compute_dtype=jnp.bfloat16, tm=512, force_layerwise=False):
        assert norm_type == "none", "only norm_type='none' implemented"
        # TODO(synk): training-mode dropout + batch/layer-norm branches not implemented.
        self.num_layers = num_layers
        self.compute_dtype = jnp.dtype(compute_dtype)
        self.tm = tm
        self.force_layerwise = force_layerwise
        self.output_dim = output_dim
        self.vmem_cap = _vmem_capacity_bytes()
        key = key if key is not None else jax.random.PRNGKey(0)

        if num_layers == 1:
            dims = [(input_dim, output_dim)]
        else:
            dims = [(input_dim, hidden_dim)]
            for _ in range(num_layers - 2):
                dims.append((hidden_dim, hidden_dim))
            dims.append((hidden_dim, output_dim))

        # PyTorch-layout master params: W (dout, din), b (dout,), f32.
        self.params = []
        for (din, dout) in dims:
            key, kw, kb = jax.random.split(key, 3)
            bound = 1.0 / (din ** 0.5)  # PyTorch Linear default init
            w = jax.random.uniform(kw, (dout, din), jnp.float32, -bound, bound)
            b = jax.random.uniform(kb, (dout,), jnp.float32, -bound, bound)
            self.params.append((w, b))

        # ONE-TIME: transpose to (din, dout), zero-pad every feature dim to a lane
        # multiple, cast weights to the MXU input dtype. Biases stay f32.
        self.dims_p = [_round_up(d, LANE)
                       for d in ([input_dim] + [dout for (_, dout) in dims])]
        self.w_ps, self.b_ps = [], []
        for l, (w, b) in enumerate(self.params):
            dout_l, din_l = w.shape
            w_p = jnp.zeros((self.dims_p[l], self.dims_p[l + 1]), self.compute_dtype)
            w_p = w_p.at[:din_l, :dout_l].set(w.T.astype(self.compute_dtype))
            b_p = jnp.zeros((1, self.dims_p[l + 1]), jnp.float32)
            b_p = b_p.at[0, :dout_l].set(b)
            self.w_ps.append(w_p)
            self.b_ps.append(b_p)

    def __call__(self, feats):
        n, din = feats.shape
        out_dtype = feats.dtype
        dims_p = self.dims_p
        item_w = self.compute_dtype.itemsize
        x_item = max(item_w, jnp.dtype(feats.dtype).itemsize)
        out_item = jnp.dtype(out_dtype).itemsize
        align = _row_align(self.compute_dtype)
        n_eff = _round_up(n, align)

        # Single-buffered resident weight/bias VMEM footprint + per-row tile bytes.
        w_bytes = (sum(w.size * item_w for w in self.w_ps)
                   + sum(8 * b.shape[1] * 4 for b in self.b_ps))
        per_row = (2 * dims_p[0] * x_item + 2 * dims_p[-1] * out_item
                   + max(dims_p) * (4 + item_w))
        budget = int(0.7 * self.vmem_cap)
        use_fused = (not self.force_layerwise) and (w_bytes + align * per_row <= budget)

        if use_fused:
            tm_cap = (budget - w_bytes) // per_row
            tm_cap = max(align, (tm_cap // align) * align)
            tm_req = max(align, _round_up(self.tm, align))
            tm_eff = min(tm_req, tm_cap, n_eff)

            # Only materialize a padded copy when the feature dim needs lane padding
            # or the row count needs sublane padding; otherwise feed feats directly
            # (the kernel casts to the MXU dtype on-chip).
            if din != dims_p[0] or n_eff != n:
                x_in = jnp.zeros((n_eff, dims_p[0]), self.compute_dtype)
                x_in = x_in.at[:n, :din].set(feats.astype(self.compute_dtype))
            else:
                x_in = feats

            vmem_need = w_bytes + tm_eff * per_row
            vmem_limit = min(max(2 * vmem_need, 32 * 1024 * 1024),
                             int(0.9 * self.vmem_cap))
            try:
                out_p = _fused_mlp_forward(
                    x_in, self.w_ps, self.b_ps, dims_p, out_dtype,
                    tm_eff=tm_eff, compute_dtype=self.compute_dtype,
                    vmem_limit=vmem_limit, buffered=True)
            except Exception:
                # Older jax may not accept pipeline_mode=pl.Buffered(1); retry with
                # default (double-buffered) weight specs.
                out_p = _fused_mlp_forward(
                    x_in, self.w_ps, self.b_ps, dims_p, out_dtype,
                    tm_eff=tm_eff, compute_dtype=self.compute_dtype,
                    vmem_limit=vmem_limit, buffered=False)
            return out_p[:n, :self.output_dim]

        # Layer-wise K/N-tiled fallback: weights streamed per layer with an f32
        # accumulator (needed when resident weights exceed VMEM, e.g. on v7x).
        x_in = jnp.zeros((n_eff, dims_p[0]), self.compute_dtype)
        x_in = x_in.at[:n, :din].set(feats.astype(self.compute_dtype))
        h = x_in
        for l in range(self.num_layers):
            last = (l == self.num_layers - 1)
            h = _tiled_linear(h, self.w_ps[l], self.b_ps[l],
                              out_dtype=(out_dtype if last else self.compute_dtype),
                              apply_relu=not last, tm=self.tm,
                              vmem_cap=self.vmem_cap)
        return h[:n, :self.output_dim]


def mlp_reference(feats, params, num_layers):
    h = feats
    for l, (w, b) in enumerate(params):
        h = h @ w.T + b
        if l != num_layers - 1:
            h = jnp.maximum(h, 0.0)
    return h


if __name__ == "__main__":
    key = jax.random.PRNGKey(0)
    k_in, k_param = jax.random.split(key)

    N, input_dim, hidden_dim, output_dim, num_layers = 64, 32, 32, 8, 3
    feats = jax.random.normal(k_in, (N, input_dim), jnp.float32)

    # f32 fused path (tight check against reference).
    model_f32 = MLPPallas(num_layers, input_dim, hidden_dim, output_dim,
                          dropout_ratio=0.0, norm_type="none", key=k_param,
                          compute_dtype=jnp.float32)
    out_f32 = jax.block_until_ready(model_f32(feats))
    ref = mlp_reference(feats, model_f32.params, num_layers)
    assert out_f32.shape == (N, output_dim)
    assert jnp.allclose(out_f32, ref, atol=1e-5, rtol=1e-5), "f32 fused mismatch"

    # Default bf16-MXU path (f32 accumulate, f32 bias/ReLU) - recommended config.
    model_bf16 = MLPPallas(num_layers, input_dim, hidden_dim, output_dim,
                           dropout_ratio=0.0, norm_type="none", key=k_param)
    out_bf16 = jax.block_until_ready(model_bf16(feats))
    assert out_bf16.shape == (N, output_dim)
    assert jnp.allclose(out_bf16, ref, atol=5e-2, rtol=5e-2), "bf16 fused mismatch"

    # Layer-wise K/N-tiled fallback (auto-selected for very large hidden dims on
    # v7x's 64 MiB VMEM); forced here to validate correctness.
    model_lw = MLPPallas(num_layers, input_dim, hidden_dim, output_dim,
                         dropout_ratio=0.0, norm_type="none", key=k_param,
                         compute_dtype=jnp.float32, force_layerwise=True)
    out_lw = jax.block_until_ready(model_lw(feats))
    assert jnp.allclose(out_lw, ref, atol=1e-5, rtol=1e-5), "layerwise fallback mismatch"

    # Ragged row count (exercises the partial tail row tile / masked store).
    feats_r = jax.random.normal(jax.random.PRNGKey(2), (70, input_dim), jnp.float32)
    out_r = jax.block_until_ready(model_f32(feats_r))
    ref_r = mlp_reference(feats_r, model_f32.params, num_layers)
    assert jnp.allclose(out_r, ref_r, atol=1e-5, rtol=1e-5), "ragged-N mismatch"

    print("KERNEL_OK")
</pallas_src>

<mosaic_0001>
module attributes {stable_mosaic.version = 11 : i64} {
  func.func @_fused_mlp_kernel(%arg0: i32, %arg1: memref<64x128xf32, #tpu.memory_space<vmem>>, %arg2: memref<128x128xf32, #tpu.memory_space<vmem>>, %arg3: memref<1x128xf32, #tpu.memory_space<vmem>>, %arg4: memref<128x128xf32, #tpu.memory_space<vmem>>, %arg5: memref<1x128xf32, #tpu.memory_space<vmem>>, %arg6: memref<128x128xf32, #tpu.memory_space<vmem>>, %arg7: memref<1x128xf32, #tpu.memory_space<vmem>>, %arg8: memref<64x128xf32, #tpu.memory_space<vmem>>) attributes {dimension_semantics = [#tpu.dimension_semantics<parallel>], iteration_bounds = array<i64: 1>, scalar_prefetch = 0 : i64, scratch_operands = 0 : i64, tpu.core_type = #tpu.core_type<tc>, window_params = [{transform_indices = @transform_0, window_bounds = array<i64: 64, 128>}, {pipeline_mode = #tpu.pipeline_mode<synchronous>, transform_indices = @transform_1, window_bounds = array<i64: 128, 128>}, {pipeline_mode = #tpu.pipeline_mode<synchronous>, transform_indices = @transform_2, window_bounds = array<i64: 1, 128>}, {pipeline_mode = #tpu.pipeline_mode<synchronous>, transform_indices = @transform_3, window_bounds = array<i64: 128, 128>}, {pipeline_mode = #tpu.pipeline_mode<synchronous>, transform_indices = @transform_4, window_bounds = array<i64: 1, 128>}, {pipeline_mode = #tpu.pipeline_mode<synchronous>, transform_indices = @transform_5, window_bounds = array<i64: 128, 128>}, {pipeline_mode = #tpu.pipeline_mode<synchronous>, transform_indices = @transform_6, window_bounds = array<i64: 1, 128>}, {transform_indices = @transform_7, window_bounds = array<i64: 64, 128>}]} {
    %c0 = arith.constant 0 : index
    %c0_0 = arith.constant 0 : index
    %0 = vector.load %arg1[%c0, %c0_0] : memref<64x128xf32, #tpu.memory_space<vmem>>, vector<64x128xf32>
    %c0_1 = arith.constant 0 : index
    %c0_2 = arith.constant 0 : index
    %1 = vector.load %arg2[%c0_1, %c0_2] : memref<128x128xf32, #tpu.memory_space<vmem>>, vector<128x128xf32>
    %c0_3 = arith.constant 0 : index
    %c0_4 = arith.constant 0 : index
    %2 = vector.load %arg3[%c0_3, %c0_4] : memref<1x128xf32, #tpu.memory_space<vmem>>, vector<1x128xf32>
    %cst = arith.constant dense<0.000000e+00> : vector<64x128xf32>
    %3 = tpu.matmul %0, %1, %cst {dimension_numbers = #tpu.dot_dimension_numbers<[1], [0], [0], [1], [0, 0, 1, 1], [], []>} : vector<64x128xf32>, vector<128x128xf32>, vector<64x128xf32> -> vector<64x128xf32>
    %4 = vector.broadcast %2 : vector<1x128xf32> to vector<64x128xf32>
    %5 = arith.addf %3, %4 : vector<64x128xf32>
    %cst_5 = arith.constant 0.000000e+00 : f32
    %6 = vector.broadcast %cst_5 : f32 to vector<64x128xf32>
    %7 = arith.maximumf %5, %6 : vector<64x128xf32>
    %c0_6 = arith.constant 0 : index
    %c0_7 = arith.constant 0 : index
    %8 = vector.load %arg4[%c0_6, %c0_7] : memref<128x128xf32, #tpu.memory_space<vmem>>, vector<128x128xf32>
    %c0_8 = arith.constant 0 : index
    %c0_9 = arith.constant 0 : index
    %9 = vector.load %arg5[%c0_8, %c0_9] : memref<1x128xf32, #tpu.memory_space<vmem>>, vector<1x128xf32>
    %cst_10 = arith.constant dense<0.000000e+00> : vector<64x128xf32>
    %10 = tpu.matmul %7, %8, %cst_10 {dimension_numbers = #tpu.dot_dimension_numbers<[1], [0], [0], [1], [0, 0, 1, 1], [], []>} : vector<64x128xf32>, vector<128x128xf32>, vector<64x128xf32> -> vector<64x128xf32>
    %11 = vector.broadcast %9 : vector<1x128xf32> to vector<64x128xf32>
    %12 = arith.addf %10, %11 : vector<64x128xf32>
    %cst_11 = arith.constant 0.000000e+00 : f32
    %13 = vector.broadcast %cst_11 : f32 to vector<64x128xf32>
    %14 = arith.maximumf %12, %13 : vector<64x128xf32>
    %c0_12 = arith.constant 0 : index
    %c0_13 = arith.constant 0 : index
    %15 = vector.load %arg6[%c0_12, %c0_13] : memref<128x128xf32, #tpu.memory_space<vmem>>, vector<128x128xf32>
    %c0_14 = arith.constant 0 : index
    %c0_15 = arith.constant 0 : index
    %16 = vector.load %arg7[%c0_14, %c0_15] : memref<1x128xf32, #tpu.memory_space<vmem>>, vector<1x128xf32>
    %cst_16 = arith.constant dense<0.000000e+00> : vector<64x128xf32>
    %17 = tpu.matmul %14, %15, %cst_16 {dimension_numbers = #tpu.dot_dimension_numbers<[1], [0], [0], [1], [0, 0, 1, 1], [], []>} : vector<64x128xf32>, vector<128x128xf32>, vector<64x128xf32> -> vector<64x128xf32>
    %18 = vector.broadcast %16 : vector<1x128xf32> to vector<64x128xf32>
    %19 = arith.addf %17, %18 : vector<64x128xf32>
    %c0_17 = arith.constant 0 : index
    %c0_18 = arith.constant 0 : index
    %20 = vector.load %arg8[%c0_17, %c0_18] : memref<64x128xf32, #tpu.memory_space<vmem>>, vector<64x128xf32>
    tpu.vector_store %arg8[%c0_17, %c0_18], %19 {strides = array<i32>} : memref<64x128xf32, #tpu.memory_space<vmem>>, vector<64x128xf32>,
    return
  }
  func.func @transform_0(%arg0: i32) -> (i32, i32) {
    %c0_i32 = arith.constant 0 : i32
    %c0_i32_0 = arith.constant 0 : i32
    return %arg0, %c0_i32 : i32, i32
  }
  func.func @transform_1(%arg0: i32) -> (i32, i32) {
    %c0_i32 = arith.constant 0 : i32
    %c0_i32_0 = arith.constant 0 : i32
    %c0_i32_1 = arith.constant 0 : i32
    return %c0_i32, %c0_i32_0 : i32, i32
  }
  func.func @transform_2(%arg0: i32) -> (i32, i32) {
    %c0_i32 = arith.constant 0 : i32
    %c0_i32_0 = arith.constant 0 : i32
    %c0_i32_1 = arith.constant 0 : i32
    return %c0_i32, %c0_i32_0 : i32, i32
  }
  func.func @transform_3(%arg0: i32) -> (i32, i32) {
    %c0_i32 = arith.constant 0 : i32
    %c0_i32_0 = arith.constant 0 : i32
    %c0_i32_1 = arith.constant 0 : i32
    return %c0_i32, %c0_i32_0 : i32, i32
  }
  func.func @transform_4(%arg0: i32) -> (i32, i32) {
    %c0_i32 = arith.constant 0 : i32
    %c0_i32_0 = arith.constant 0 : i32
    %c0_i32_1 = arith.constant 0 : i32
    return %c0_i32, %c0_i32_0 : i32, i32
  }
  func.func @transform_5(%arg0: i32) -> (i32, i32) {
    %c0_i32 = arith.constant 0 : i32
    %c0_i32_0 = arith.constant 0 : i32
    %c0_i32_1 = arith.constant 0 : i32
    return %c0_i32, %c0_i32_0 : i32, i32
  }
  func.func @transform_6(%arg0: i32) -> (i32, i32) {
    %c0_i32 = arith.constant 0 : i32
    %c0_i32_0 = arith.constant 0 : i32
    %c0_i32_1 = arith.constant 0 : i32
    return %c0_i32, %c0_i32_0 : i32, i32
  }
  func.func @transform_7(%arg0: i32) -> (i32, i32) {
    %c0_i32 = arith.constant 0 : i32
    %c0_i32_0 = arith.constant 0 : i32
    return %arg0, %c0_i32 : i32, i32
  }
}

module attributes {stable_mosaic.version = 11 : i64} {
  func.func @_fused_mlp_kernel(%arg0: i32, %arg1: memref<64x128xf32, #tpu.memory_space<vmem>>, %arg2: memref<128x128xf32, #tpu.memory_space<vmem>>, %arg3: memref<1x128xf32, #tpu.memory_space<vmem>>, %arg4: memref<128x128xf32, #tpu.memory_space<vmem>>, %arg5: memref<1x128xf32, #tpu.memory_space<vmem>>, %arg6: memref<128x128xf32, #tpu.memory_space<vmem>>, %arg7: memref<1x128xf32, #tpu.memory_space<vmem>>, %arg8: memref<64x128xf32, #tpu.memory_space<vmem>>) attributes {dimension_semantics = [#tpu.dimension_semantics<parallel>], iteration_bounds = array<i64: 1>, scalar_prefetch = 0 : i64, scratch_operands = 0 : i64, tpu.core_type = #tpu.core_type<tc>, window_params = [{transform_indices = @transform_0, window_bounds = array<i64: 64, 128>}, {pipeline_mode = #tpu.pipeline_mode<synchronous>, transform_indices = @transform_1, window_bounds = array<i64: 128, 128>}, {pipeline_mode = #tpu.pipeline_mode<synchronous>, transform_indices = @transform_2, window_bounds = array<i64: 1, 128>}, {pipeline_mode = #tpu.pipeline_mode<synchronous>, transform_indices = @transform_3, window_bounds = array<i64: 128, 128>}, {pipeline_mode = #tpu.pipeline_mode<synchronous>, transform_indices = @transform_4, window_bounds = array<i64: 1, 128>}, {pipeline_mode = #tpu.pipeline_mode<synchronous>, transform_indices = @transform_5, window_bounds = array<i64: 128, 128>}, {pipeline_mode = #tpu.pipeline_mode<synchronous>, transform_indices = @transform_6, window_bounds = array<i64: 1, 128>}, {transform_indices = @transform_7, window_bounds = array<i64: 64, 128>}]} {
    %c0 = arith.constant 0 : index
    %c0_0 = arith.constant 0 : index
    %0 = vector.load %arg1[%c0, %c0_0] : memref<64x128xf32, #tpu.memory_space<vmem>>, vector<64x128xf32>
    %c0_1 = arith.constant 0 : index
    %c0_2 = arith.constant 0 : index
    %1 = vector.load %arg2[%c0_1, %c0_2] : memref<128x128xf32, #tpu.memory_space<vmem>>, vector<128x128xf32>
    %c0_3 = arith.constant 0 : index
    %c0_4 = arith.constant 0 : index
    %2 = vector.load %arg3[%c0_3, %c0_4] : memref<1x128xf32, #tpu.memory_space<vmem>>, vector<1x128xf32>
    %cst = arith.constant dense<0.000000e+00> : vector<64x128xf32>
    %3 = tpu.matmul %0, %1, %cst {dimension_numbers = #tpu.dot_dimension_numbers<[1], [0], [0], [1], [0, 0, 1, 1], [], []>} : vector<64x128xf32>, vector<128x128xf32>, vector<64x128xf32> -> vector<64x128xf32>
    %4 = vector.broadcast %2 : vector<1x128xf32> to vector<64x128xf32>
    %5 = arith.addf %3, %4 : vector<64x128xf32>
    %cst_5 = arith.constant 0.000000e+00 : f32
    %6 = vector.broadcast %cst_5 : f32 to vector<64x128xf32>
    %7 = arith.maximumf %5, %6 : vector<64x128xf32>
    %c0_6 = arith.constant 0 : index
    %c0_7 = arith.constant 0 : index
    %8 = vector.load %arg4[%c0_6, %c0_7] : memref<128x128xf32, #tpu.memory_space<vmem>>, vector<128x128xf32>
    %c0_8 = arith.constant 0 : index
    %c0_9 = arith.constant 0 : index
    %9 = vector.load %arg5[%c0_8, %c0_9] : memref<1x128xf32, #tpu.memory_space<vmem>>, vector<1x128xf32>
    %cst_10 = arith.constant dense<0.000000e+00> : vector<64x128xf32>
    %10 = tpu.matmul %7, %8, %cst_10 {dimension_numbers = #tpu.dot_dimension_numbers<[1], [0], [0], [1], [0, 0, 1, 1], [], []>} : vector<64x128xf32>, vector<128x128xf32>, vector<64x128xf32> -> vector<64x128xf32>
    %11 = vector.broadcast %9 : vector<1x128xf32> to vector<64x128xf32>
    %12 = arith.addf %10, %11 : vector<64x128xf32>
    %cst_11 = arith.constant 0.000000e+00 : f32
    %13 = vector.broadcast %cst_11 : f32 to vector<64x128xf32>
    %14 = arith.maximumf %12, %13 : vector<64x128xf32>
    %c0_12 = arith.constant 0 : index
    %c0_13 = arith.constant 0 : index
    %15 = vector.load %arg6[%c0_12, %c0_13] : memref<128x128xf32, #tpu.memory_space<vmem>>, vector<128x128xf32>
    %c0_14 = arith.constant 0 : index
    %c0_15 = arith.constant 0 : index
    %16 = vector.load %arg7[%c0_14, %c0_15] : memref<1x128xf32, #tpu.memory_space<vmem>>, vector<1x128xf32>
    %cst_16 = arith.constant dense<0.000000e+00> : vector<64x128xf32>
    %17 = tpu.matmul %14, %15, %cst_16 {dimension_numbers = #tpu.dot_dimension_numbers<[1], [0], [0], [1], [0, 0, 1, 1], [], []>} : vector<64x128xf32>, vector<128x128xf32>, vector<64x128xf32> -> vector<64x128xf32>
    %18 = vector.broadcast %16 : vector<1x128xf32> to vector<64x128xf32>
    %19 = arith.addf %17, %18 : vector<64x128xf32>
    %c0_17 = arith.constant 0 : index
    %c0_18 = arith.constant 0 : index
    %20 = vector.load %arg8[%c0_17, %c0_18] : memref<64x128xf32, #tpu.memory_space<vmem>>, vector<64x128xf32>
    tpu.vector_store %arg8[%c0_17, %c0_18], %19 {strides = array<i32>} : memref<64x128xf32, #tpu.memory_space<vmem>>, vector<64x128xf32>,
    return
  }
  func.func @transform_0(%arg0: i32) -> (i32, i32) {
    %c0_i32 = arith.constant 0 : i32
    %c0_i32_0 = arith.constant 0 : i32
    return %arg0, %c0_i32 : i32, i32
  }
  func.func @transform_1(%arg0: i32) -> (i32, i32) {
    %c0_i32 = arith.constant 0 : i32
    %c0_i32_0 = arith.constant 0 : i32
    %c0_i32_1 = arith.constant 0 : i32
    return %c0_i32, %c0_i32_0 : i32, i32
  }
  func.func @transform_2(%arg0: i32) -> (i32, i32) {
    %c0_i32 = arith.constant 0 : i32
    %c0_i32_0 = arith.constant 0 : i32
    %c0_i32_1 = arith.constant 0 : i32
    return %c0_i32, %c0_i32_0 : i32, i32
  }
  func.func @transform_3(%arg0: i32) -> (i32, i32) {
    %c0_i32 = arith.constant 0 : i32
    %c0_i32_0 = arith.constant 0 : i32
    %c0_i32_1 = arith.constant 0 : i32
    return %c0_i32, %c0_i32_0 : i32, i32
  }
  func.func @transform_4(%arg0: i32) -> (i32, i32) {
    %c0_i32 = arith.constant 0 : i32
    %c0_i32_0 = arith.constant 0 : i32
    %c0_i32_1 = arith.constant 0 : i32
    return %c0_i32, %c0_i32_0 : i32, i32
  }
  func.func @transform_5(%arg0: i32) -> (i32, i32) {
    %c0_i32 = arith.constant 0 : i32
    %c0_i32_0 = arith.constant 0 : i32
    %c0_i32_1 = arith.constant 0 : i32
    return %c0_i32, %c0_i32_0 : i32, i32
  }
  func.func @transform_6(%arg0: i32) -> (i32, i32) {
    %c0_i32 = arith.constant 0 : i32
    %c0_i32_0 = arith.constant 0 : i32
    %c0_i32_1 = arith.constant 0 : i32
    return %c0_i32, %c0_i32_0 : i32, i32
  }
  func.func @transform_7(%arg0: i32) -> (i32, i32) {
    %c0_i32 = arith.constant 0 : i32
    %c0_i32_0 = arith.constant 0 : i32
    return %arg0, %c0_i32 : i32, i32
  }
}

</mosaic_0001>

<llo_original>
// kernel: tpu_custom_call.1
$region0: #{tpu_custom_call.1}
  #allocation0 [shape = 'u32[]', space=smem, size = 0x4, offset = 0x4, fixed_abs, tag = 'smem constant byte address 0x4 - core index']
  #allocation1 [shape = 'u32[72,128]{1,0:T(1,128)}', space=vmem, size = 0x9000, scoped, tag = 'internal scratch']
  %s0 = inlined_call_operand.hbm [shape: f32[64,128], index: 0, kind: input, shape index: {}]
  %s1 = inlined_call_operand.hbm [shape: f32[128,128], index: 1, kind: input, shape index: {}]
  %s2 = inlined_call_operand.vmem [shape: f32[1,128], index: 2, kind: input, shape index: {}]
  %s3 = inlined_call_operand.hbm [shape: f32[128,128], index: 3, kind: input, shape index: {}]
  %s4 = inlined_call_operand.vmem [shape: f32[1,128], index: 4, kind: input, shape index: {}]
  %s5 = inlined_call_operand.hbm [shape: f32[128,128], index: 5, kind: input, shape index: {}]
  %s6 = inlined_call_operand.vmem [shape: f32[1,128], index: 6, kind: input, shape index: {}]
  %s7 = inlined_call_operand.hbm [shape: f32[64,128], index: 7, kind: output, shape index: {}]
  %s8 = sld [smem:[#allocation0]]
  $region54: #{tpu_custom_call.1} parent=0
    _
  %s10 = ssub.s32 1, %s8
  %s11 = scalar_select 0, %s10, %s8
  $region1: #{tpu_custom_call.1} parent=0
    #allocation2 [shape = 'u8[32768]{0}', space=vmem, size = 0x8000, scoped, tag = 'input window, operand 0, single buffered']
    #allocation3 [shape = 's32[1]{0}', space=sflag, size = 0x4, scoped, tag = 'scoped memory for tpu_custom_call.1']
    #allocation4 [shape = 's32[1]{0}', space=sflag, size = 0x4, scoped, tag = 'scoped memory for tpu_custom_call.1']
    #allocation5 [shape = 'u8[65536]{0}', space=vmem, size = 0x10000, scoped, tag = 'input window, operand 1, single buffered']
    #allocation6 [shape = 's32[1]{0}', space=sflag, size = 0x4, scoped, tag = 'scoped memory for tpu_custom_call.1']
    #allocation7 [shape = 'u8[65536]{0}', space=vmem, size = 0x10000, scoped, tag = 'input window, operand 3, single buffered']
    #allocation8 [shape = 'u8[65536]{0}', space=vmem, size = 0x10000, scoped, tag = 'input window, operand 5, single buffered']
    #allocation9 [shape = 's32[1]{0}', space=sflag, size = 0x4, scoped, tag = 'scoped memory for tpu_custom_call.1']
    #allocation10 [shape = 'u8[32768]{0}', space=vmem, size = 0x8000, scoped, tag = 'output window, operand 0, single buffered']
    %12 = vsyncpa [#allocation3], 0
    %13 = vsyncpa [#allocation6], 0
    %14 = vsyncpa [#allocation9], 0
    %15 = vsyncpa [#allocation4], 0
    // Predicated region
    $region2: #{tpu_custom_call.1} parent=1 // pred_check
      _
    $region3: #{tpu_custom_call.1} parent=1 // pred_check_branch
      %17 = sbr.rel (0) target = $region5
    $region4: #{tpu_custom_call.1} parent=1 // pred_region
      %19 = vsyncadd [#allocation3], 0
      %s20 = sshll.u32 %s0, 4
      %s21 = int_to_ptr.hbm [resolvable:$true] %s20
      %s22 = sshll.u32 [#allocation2], 4
      %s23 = int_to_ptr.vmem [resolvable:$true] %s22
      %28 = dma.hbm_to_vmem [thread:$0]  %s21, 1024, %s23, [#allocation3], 128, 128, 8
    $region5: #{tpu_custom_call.1} parent=1 // pred_fallthru
      _
    // Predicated region
    $region6: #{tpu_custom_call.1} parent=1 // pred_check
      _
    $region7: #{tpu_custom_call.1} parent=1 // pred_check_branch
      %30 = sbr.rel (0) target = $region9
    $region8: #{tpu_custom_call.1} parent=1 // pred_region
      %32 = vsyncadd [#allocation6], 0
      %s33 = sshll.u32 %s1, 4
      %s34 = int_to_ptr.hbm [resolvable:$true] %s33
      %s35 = sshll.u32 [#allocation5], 4
      %s36 = int_to_ptr.vmem [resolvable:$true] %s35
      %41 = dma.hbm_to_vmem [thread:$0]  %s34, 2048, %s36, [#allocation6], 128, 128, 8
    $region9: #{tpu_custom_call.1} parent=1 // pred_fallthru
      _
    // Predicated region
    $region10: #{tpu_custom_call.1} parent=1 // pred_check
      _
    $region11: #{tpu_custom_call.1} parent=1 // pred_check_branch
      %43 = sbr.rel (0) target = $region13
    $region12: #{tpu_custom_call.1} parent=1 // pred_region
      _
    $region13: #{tpu_custom_call.1} parent=1 // pred_fallthru
      _
    // Predicated region
    $region14: #{tpu_custom_call.1} parent=1 // pred_check
      _
    $region15: #{tpu_custom_call.1} parent=1 // pred_check_branch
      %45 = sbr.rel (0) target = $region17
    $region16: #{tpu_custom_call.1} parent=1 // pred_region
      %47 = vsyncadd [#allocation6], 0
      %s48 = sshll.u32 %s3, 4
      %s49 = int_to_ptr.hbm [resolvable:$true] %s48
      %s50 = sshll.u32 [#allocation7], 4
      %s51 = int_to_ptr.vmem [resolvable:$true] %s50
      %56 = dma.hbm_to_vmem [thread:$0]  %s49, 2048, %s51, [#allocation6], 128, 128, 8
    $region17: #{tpu_custom_call.1} parent=1 // pred_fallthru
      _
    // Predicated region
    $region18: #{tpu_custom_call.1} parent=1 // pred_check
      _
    $region19: #{tpu_custom_call.1} parent=1 // pred_check_branch
      %58 = sbr.rel (0) target = $region21
    $region20: #{tpu_custom_call.1} parent=1 // pred_region
      _
    $region21: #{tpu_custom_call.1} parent=1 // pred_fallthru
      _
    // Predicated region
    $region22: #{tpu_custom_call.1} parent=1 // pred_check
      _
    $region23: #{tpu_custom_call.1} parent=1 // pred_check_branch
      %60 = sbr.rel (0) target = $region25
    $region24: #{tpu_custom_call.1} parent=1 // pred_region
      %62 = vsyncadd [#allocation9], 0
      %s63 = sshll.u32 %s5, 4
      %s64 = int_to_ptr.hbm [resolvable:$true] %s63
      %s65 = sshll.u32 [#allocation8], 4
      %s66 = int_to_ptr.vmem [resolvable:$true] %s65
      %71 = dma.hbm_to_vmem [thread:$0]  %s64, 2048, %s66, [#allocation9], 128, 128, 8
    $region25: #{tpu_custom_call.1} parent=1 // pred_fallthru
      _
    // Predicated region
    $region26: #{tpu_custom_call.1} parent=1 // pred_check
      _
    $region27: #{tpu_custom_call.1} parent=1 // pred_check_branch
      %73 = sbr.rel (0) target = $region29
    $region28: #{tpu_custom_call.1} parent=1 // pred_region
      _
    $region29: #{tpu_custom_call.1} parent=1 // pred_fallthru
      _
    // Predicated region
    $region30: #{tpu_custom_call.1} parent=1 // pred_check
      _
    $region31: #{tpu_custom_call.1} parent=1 // pred_check_branch
      %75 = sbr.rel (0) target = $region33
    $region32: #{tpu_custom_call.1} parent=1 // pred_region
      %77 = dma.done [#allocation3], 1024
    $region33: #{tpu_custom_call.1} parent=1 // pred_fallthru
      _
    // Predicated region
    $region34: #{tpu_custom_call.1} parent=1 // pred_check
      _
    $region35: #{tpu_custom_call.1} parent=1 // pred_check_branch
      %79 = sbr.rel (0) target = $region37
    $region36: #{tpu_custom_call.1} parent=1 // pred_region
      %81 = dma.done [#allocation6], 2048
    $region37: #{tpu_custom_call.1} parent=1 // pred_fallthru
      _
    // Predicated region
    $region38: #{tpu_custom_call.1} parent=1 // pred_check
      _
    $region39: #{tpu_custom_call.1} parent=1 // pred_check_branch
      %83 = sbr.rel (0) target = $region41
    $region40: #{tpu_custom_call.1} parent=1 // pred_region
      %85 = dma.done [#allocation6], 2048
    $region41: #{tpu_custom_call.1} parent=1 // pred_fallthru
      _
    // Predicated region
    $region42: #{tpu_custom_call.1} parent=1 // pred_check
      _
    $region43: #{tpu_custom_call.1} parent=1 // pred_check_branch
      %87 = sbr.rel (0) target = $region45
    $region44: #{tpu_custom_call.1} parent=1 // pred_region
      %89 = dma.done [#allocation9], 2048
    $region45: #{tpu_custom_call.1} parent=1 // pred_fallthru
      _
    %v90 = vld [vmem:[#allocation2] sm:$0xff]
    %v91 = vld [vmem:[#allocation2 + $0x8] sm:$0xff]
    %v92 = vld [vmem:[#allocation2 + $0x10] sm:$0xff]
    %v93 = vld [vmem:[#allocation2 + $0x18] sm:$0xff]
    %v94 = vld [vmem:[#allocation2 + $0x20] sm:$0xff]
    %v95 = vld [vmem:[#allocation2 + $0x28] sm:$0xff]
    %v96 = vld [vmem:[#allocation2 + $0x30] sm:$0xff]
    %v97 = vld [vmem:[#allocation2 + $0x38] sm:$0xff]
    %v98 = vld [vmem:[#allocation5] sm:$0xff]
    %v99 = vld [vmem:[#allocation5 + $0x8] sm:$0xff]
    %v100 = vld [vmem:[#allocation5 + $0x10] sm:$0xff]
    %v101 = vld [vmem:[#allocation5 + $0x18] sm:$0xff]
    %v102 = vld [vmem:[#allocation5 + $0x20] sm:$0xff]
    %v103 = vld [vmem:[#allocation5 + $0x28] sm:$0xff]
    %v104 = vld [vmem:[#allocation5 + $0x30] sm:$0xff]
    %v105 = vld [vmem:[#allocation5 + $0x38] sm:$0xff]
    %v106 = vld [vmem:[#allocation5 + $0x40] sm:$0xff]
    %v107 = vld [vmem:[#allocation5 + $0x48] sm:$0xff]
    %v108 = vld [vmem:[#allocation5 + $0x50] sm:$0xff]
    %v109 = vld [vmem:[#allocation5 + $0x58] sm:$0xff]
    %v110 = vld [vmem:[#allocation5 + $0x60] sm:$0xff]
    %v111 = vld [vmem:[#allocation5 + $0x68] sm:$0xff]
    %v112 = vld [vmem:[#allocation5 + $0x70] sm:$0xff]
    %v113 = vld [vmem:[#allocation5 + $0x78] sm:$0xff]
    %v114 = vld [vmem:[%s2] sm:$0x1]
    %v116 = vperm.slane %v114, 0
    %118 = vmatpush.msra.mxu0 %v113
    %119 = vmatpush.msra.mxu0 %v112
    %120 = vmatpush.msra.mxu0 %v111
    %121 = vmatpush.msra.mxu0 %v110
    %122 = vmatpush.msra.mxu0 %v109
    %123 = vmatpush.msra.mxu0 %v108
    %124 = vmatpush.msra.mxu0 %v107
    %125 = vmatpush.msra.mxu0 %v106
    %126 = vmatpush.msra.mxu0 %v105
    %127 = vmatpush.msra.mxu0 %v104
    %128 = vmatpush.msra.mxu0 %v103
    %129 = vmatpush.msra.mxu0 %v102
    %130 = vmatpush.msra.mxu0 %v101
    %131 = vmatpush.msra.mxu0 %v100
    %132 = vmatpush.msra.mxu0 %v99
    %133 = vmatpush.msra.mxu0 %v98
    %134 = vmatmul.f32.gmra.mxu0 %v90
    %v135 = vpop.f32.mrf.mxu0
    %v136 = vadd.f32 %v116, %v135
    %137 = vmatmul.f32.gmra.mxu0 %v91
    %v138 = vpop.f32.mrf.mxu0
    %v139 = vadd.f32 %v116, %v138
    %140 = vmatmul.f32.gmra.mxu0 %v92
    %v141 = vpop.f32.mrf.mxu0
    %v142 = vadd.f32 %v116, %v141
    %143 = vmatmul.f32.gmra.mxu0 %v93
    %v144 = vpop.f32.mrf.mxu0
    %v145 = vadd.f32 %v116, %v144
    %146 = vmatmul.f32.gmra.mxu0 %v94
    %v147 = vpop.f32.mrf.mxu0
    %v148 = vadd.f32 %v116, %v147
    %149 = vmatmul.f32.gmra.mxu0 %v95
    %v150 = vpop.f32.mrf.mxu0
    %v151 = vadd.f32 %v116, %v150
    %152 = vmatmul.f32.gmra.mxu0 %v96
    %v153 = vpop.f32.mrf.mxu0
    %v154 = vadd.f32 %v116, %v153
    %155 = vmatmul.f32.gmra.mxu0 %v97
    %v156 = vpop.f32.mrf.mxu0
    %v157 = vadd.f32 %v116, %v156
    %158 = vdwg.mxu0
    %v159 = vmax.f32 %v136, 0.0
    %v160 = vmax.f32 %v139, 0.0
    %v161 = vmax.f32 %v142, 0.0
    %v162 = vmax.f32 %v145, 0.0
    %v163 = vmax.f32 %v148, 0.0
    %v164 = vmax.f32 %v151, 0.0
    %v165 = vmax.f32 %v154, 0.0
    %v166 = vmax.f32 %v157, 0.0
    %v167 = vld [vmem:[#allocation7] sm:$0xff]
    %v168 = vld [vmem:[#allocation7 + $0x8] sm:$0xff]
    %v169 = vld [vmem:[#allocation7 + $0x10] sm:$0xff]
    %v170 = vld [vmem:[#allocation7 + $0x18] sm:$0xff]
    %v171 = vld [vmem:[#allocation7 + $0x20] sm:$0xff]
    %v172 = vld [vmem:[#allocation7 + $0x28] sm:$0xff]
    %v173 = vld [vmem:[#allocation7 + $0x30] sm:$0xff]
    %v174 = vld [vmem:[#allocation7 + $0x38] sm:$0xff]
    %v175 = vld [vmem:[#allocation7 + $0x40] sm:$0xff]
    %v176 = vld [vmem:[#allocation7 + $0x48] sm:$0xff]
    %v177 = vld [vmem:[#allocation7 + $0x50] sm:$0xff]
    %v178 = vld [vmem:[#allocation7 + $0x58] sm:$0xff]
    %v179 = vld [vmem:[#allocation7 + $0x60] sm:$0xff]
    %v180 = vld [vmem:[#allocation7 + $0x68] sm:$0xff]
    %v181 = vld [vmem:[#allocation7 + $0x70] sm:$0xff]
    %v182 = vld [vmem:[#allocation7 + $0x78] sm:$0xff]
    %v183 = vld [vmem:[%s4] sm:$0x1]
    %v185 = vperm.slane %v183, 0
    %187 = vmatpush.msra.mxu0 %v182
    %188 = vmatpush.msra.mxu0 %v181
    %189 = vmatpush.msra.mxu0 %v180
    %190 = vmatpush.msra.mxu0 %v179
    %191 = vmatpush.msra.mxu0 %v178
    %192 = vmatpush.msra.mxu0 %v177
    %193 = vmatpush.msra.mxu0 %v176
    %194 = vmatpush.msra.mxu0 %v175
    %195 = vmatpush.msra.mxu0 %v174
    %196 = vmatpush.msra.mxu0 %v173
    %197 = vmatpush.msra.mxu0 %v172
    %198 = vmatpush.msra.mxu0 %v171
    %199 = vmatpush.msra.mxu0 %v170
    %200 = vmatpush.msra.mxu0 %v169
    %201 = vmatpush.msra.mxu0 %v168
    %202 = vmatpush.msra.mxu0 %v167
    %203 = vmatmul.f32.gmra.mxu0 %v159
    %v204 = vpop.f32.mrf.mxu0
    %v205 = vadd.f32 %v185, %v204
    %206 = vmatmul.f32.gmra.mxu0 %v160
    %v207 = vpop.f32.mrf.mxu0
    %v208 = vadd.f32 %v185, %v207
    %209 = vmatmul.f32.gmra.mxu0 %v161
    %v210 = vpop.f32.mrf.mxu0
    %v211 = vadd.f32 %v185, %v210
    %212 = vmatmul.f32.gmra.mxu0 %v162
    %v213 = vpop.f32.mrf.mxu0
    %v214 = vadd.f32 %v185, %v213
    %215 = vmatmul.f32.gmra.mxu0 %v163
    %v216 = vpop.f32.mrf.mxu0
    %v217 = vadd.f32 %v185, %v216
    %218 = vmatmul.f32.gmra.mxu0 %v164
    %v219 = vpop.f32.mrf.mxu0
    %v220 = vadd.f32 %v185, %v219
    %221 = vmatmul.f32.gmra.mxu0 %v165
    %v222 = vpop.f32.mrf.mxu0
    %v223 = vadd.f32 %v185, %v222
    %224 = vmatmul.f32.gmra.mxu0 %v166
    %v225 = vpop.f32.mrf.mxu0
    %v226 = vadd.f32 %v185, %v225
    %227 = vdwg.mxu0
    %v228 = vmax.f32 %v205, 0.0
    %v229 = vmax.f32 %v208, 0.0
    %v230 = vmax.f32 %v211, 0.0
    %v231 = vmax.f32 %v214, 0.0
    %v232 = vmax.f32 %v217, 0.0
    %v233 = vmax.f32 %v220, 0.0
    %v234 = vmax.f32 %v223, 0.0
    %v235 = vmax.f32 %v226, 0.0
    %v236 = vld [vmem:[#allocation8] sm:$0xff]
    %v237 = vld [vmem:[#allocation8 + $0x8] sm:$0xff]
    %v238 = vld [vmem:[#allocation8 + $0x10] sm:$0xff]
    %v239 = vld [vmem:[#allocation8 + $0x18] sm:$0xff]
    %v240 = vld [vmem:[#allocation8 + $0x20] sm:$0xff]
    %v241 = vld [vmem:[#allocation8 + $0x28] sm:$0xff]
    %v242 = vld [vmem:[#allocation8 + $0x30] sm:$0xff]
    %v243 = vld [vmem:[#allocation8 + $0x38] sm:$0xff]
    %v244 = vld [vmem:[#allocation8 + $0x40] sm:$0xff]
    %v245 = vld [vmem:[#allocation8 + $0x48] sm:$0xff]
    %v246 = vld [vmem:[#allocation8 + $0x50] sm:$0xff]
    %v247 = vld [vmem:[#allocation8 + $0x58] sm:$0xff]
    %v248 = vld [vmem:[#allocation8 + $0x60] sm:$0xff]
    %v249 = vld [vmem:[#allocation8 + $0x68] sm:$0xff]
    %v250 = vld [vmem:[#allocation8 + $0x70] sm:$0xff]
    %v251 = vld [vmem:[#allocation8 + $0x78] sm:$0xff]
    %v252 = vld [vmem:[%s6] sm:$0x1]
    %v254 = vperm.slane %v252, 0
    %256 = vmatpush.msra.mxu0 %v251
    %257 = vmatpush.msra.mxu0 %v250
    %258 = vmatpush.msra.mxu0 %v249
    %259 = vmatpush.msra.mxu0 %v248
    %260 = vmatpush.msra.mxu0 %v247
    %261 = vmatpush.msra.mxu0 %v246
    %262 = vmatpush.msra.mxu0 %v245
    %263 = vmatpush.msra.mxu0 %v244
    %264 = vmatpush.msra.mxu0 %v243
    %265 = vmatpush.msra.mxu0 %v242
    %266 = vmatpush.msra.mxu0 %v241
    %267 = vmatpush.msra.mxu0 %v240
    %268 = vmatpush.msra.mxu0 %v239
    %269 = vmatpush.msra.mxu0 %v238
    %270 = vmatpush.msra.mxu0 %v237
    %271 = vmatpush.msra.mxu0 %v236
    %272 = vmatmul.f32.gmra.mxu0 %v228
    %v273 = vpop.f32.mrf.mxu0
    %v274 = vadd.f32 %v254, %v273
    %275 = vmatmul.f32.gmra.mxu0 %v229
    %v276 = vpop.f32.mrf.mxu0
    %v277 = vadd.f32 %v254, %v276
    %278 = vmatmul.f32.gmra.mxu0 %v230
    %v279 = vpop.f32.mrf.mxu0
    %v280 = vadd.f32 %v254, %v279
    %281 = vmatmul.f32.gmra.mxu0 %v231
    %v282 = vpop.f32.mrf.mxu0
    %v283 = vadd.f32 %v254, %v282
    %284 = vmatmul.f32.gmra.mxu0 %v232
    %v285 = vpop.f32.mrf.mxu0
    %v286 = vadd.f32 %v254, %v285
    %287 = vmatmul.f32.gmra.mxu0 %v233
    %v288 = vpop.f32.mrf.mxu0
    %v289 = vadd.f32 %v254, %v288
    %290 = vmatmul.f32.gmra.mxu0 %v234
    %v291 = vpop.f32.mrf.mxu0
    %v292 = vadd.f32 %v254, %v291
    %293 = vmatmul.f32.gmra.mxu0 %v235
    %v294 = vpop.f32.mrf.mxu0
    %v295 = vadd.f32 %v254, %v294
    %296 = vdwg.mxu0
    %297 = vst [vmem:[#allocation10] sm:$0xff] %v274
    %298 = vst [vmem:[#allocation10 + $0x8] sm:$0xff] %v277
    %299 = vst [vmem:[#allocation10 + $0x10] sm:$0xff] %v280
    %300 = vst [vmem:[#allocation10 + $0x18] sm:$0xff] %v283
    %301 = vst [vmem:[#allocation10 + $0x20] sm:$0xff] %v286
    %302 = vst [vmem:[#allocation10 + $0x28] sm:$0xff] %v289
    %303 = vst [vmem:[#allocation10 + $0x30] sm:$0xff] %v292
    %304 = vst [vmem:[#allocation10 + $0x38] sm:$0xff] %v295
    // Predicated region
    $region46: #{tpu_custom_call.1} parent=1 // pred_check
      _
    $region47: #{tpu_custom_call.1} parent=1 // pred_check_branch
      %306 = sbr.rel (0) target = $region49
    $region48: #{tpu_custom_call.1} parent=1 // pred_region
      %308 = vsyncadd [#allocation4], 0
      %s309 = sshll.u32 [#allocation10], 4
      %s310 = int_to_ptr.vmem [resolvable:$true] %s309
      %s311 = sshll.u32 %s7, 4
      %s312 = int_to_ptr.hbm [resolvable:$true] %s311
      %317 = dma.vmem_to_hbm [thread:$0]  %s310, 1024, %s312, [#allocation4], 128, 128, 8
    $region49: #{tpu_custom_call.1} parent=1 // pred_fallthru
      _
    // Predicated region
    $region50: #{tpu_custom_call.1} parent=1 // pred_check
      _
    $region51: #{tpu_custom_call.1} parent=1 // pred_check_branch
      %319 = sbr.rel (0) target = $region53
    $region52: #{tpu_custom_call.1} parent=1 // pred_region
      %321 = dma.done [#allocation4], 1024
    $region53: #{tpu_custom_call.1} parent=1 // pred_fallthru
      _
    %322 = vsyncpa [#allocation3], 1
    %323 = vsyncpa [#allocation6], 1
    %324 = vsyncpa [#allocation9], 1
    %325 = vsyncpa [#allocation4], 1

// kernel: tpu_custom_call.1
$region0: #{tpu_custom_call.1}
  #allocation0 [shape = 'u32[]', space=smem, size = 0x4, offset = 0x4, fixed_abs, tag = 'smem constant byte address 0x4 - core index']
  #allocation1 [shape = 'u32[72,128]{1,0:T(1,128)}', space=vmem, size = 0x9000, scoped, tag = 'internal scratch']
  %s0 = inlined_call_operand.hbm [shape: f32[64,128], index: 0, kind: input, shape index: {}]
  %s1 = inlined_call_operand.hbm [shape: f32[128,128], index: 1, kind: input, shape index: {}]
  %s2 = inlined_call_operand.vmem [shape: f32[1,128], index: 2, kind: input, shape index: {}]
  %s3 = inlined_call_operand.hbm [shape: f32[128,128], index: 3, kind: input, shape index: {}]
  %s4 = inlined_call_operand.vmem [shape: f32[1,128], index: 4, kind: input, shape index: {}]
  %s5 = inlined_call_operand.hbm [shape: f32[128,128], index: 5, kind: input, shape index: {}]
  %s6 = inlined_call_operand.vmem [shape: f32[1,128], index: 6, kind: input, shape index: {}]
  %s7 = inlined_call_operand.hbm [shape: f32[64,128], index: 7, kind: output, shape index: {}]
  %s8 = sld [smem:[#allocation0]]
  $region54: #{tpu_custom_call.1} parent=0
    _
  %s10 = ssub.s32 1, %s8
  %s11 = scalar_select 0, %s10, %s8
  $region1: #{tpu_custom_call.1} parent=0
    #allocation2 [shape = 'u8[32768]{0}', space=vmem, size = 0x8000, scoped, tag = 'input window, operand 0, single buffered']
    #allocation3 [shape = 's32[1]{0}', space=sflag, size = 0x4, scoped, tag = 'scoped memory for tpu_custom_call.1']
    #allocation4 [shape = 's32[1]{0}', space=sflag, size = 0x4, scoped, tag = 'scoped memory for tpu_custom_call.1']
    #allocation5 [shape = 'u8[65536]{0}', space=vmem, size = 0x10000, scoped, tag = 'input window, operand 1, single buffered']
    #allocation6 [shape = 's32[1]{0}', space=sflag, size = 0x4, scoped, tag = 'scoped memory for tpu_custom_call.1']
    #allocation7 [shape = 'u8[65536]{0}', space=vmem, size = 0x10000, scoped, tag = 'input window, operand 3, single buffered']
    #allocation8 [shape = 'u8[65536]{0}', space=vmem, size = 0x10000, scoped, tag = 'input window, operand 5, single buffered']
    #allocation9 [shape = 's32[1]{0}', space=sflag, size = 0x4, scoped, tag = 'scoped memory for tpu_custom_call.1']
    #allocation10 [shape = 'u8[32768]{0}', space=vmem, size = 0x8000, scoped, tag = 'output window, operand 0, single buffered']
    %12 = vsyncpa [#allocation3], 0
    %13 = vsyncpa [#allocation6], 0
    %14 = vsyncpa [#allocation9], 0
    %15 = vsyncpa [#allocation4], 0
    // Predicated region
    $region2: #{tpu_custom_call.1} parent=1 // pred_check
      _
    $region3: #{tpu_custom_call.1} parent=1 // pred_check_branch
      %17 = sbr.rel (0) target = $region5
    $region4: #{tpu_custom_call.1} parent=1 // pred_region
      %19 = vsyncadd [#allocation3], 0
      %s20 = sshll.u32 %s0, 4
      %s21 = int_to_ptr.hbm [resolvable:$true] %s20
      %s22 = sshll.u32 [#allocation2], 4
      %s23 = int_to_ptr.vmem [resolvable:$true] %s22
      %28 = dma.hbm_to_vmem [thread:$0]  %s21, 1024, %s23, [#allocation3], 128, 128, 8
    $region5: #{tpu_custom_call.1} parent=1 // pred_fallthru
      _
    // Predicated region
    $region6: #{tpu_custom_call.1} parent=1 // pred_check
      _
    $region7: #{tpu_custom_call.1} parent=1 // pred_check_branch
      %30 = sbr.rel (0) target = $region9
    $region8: #{tpu_custom_call.1} parent=1 // pred_region
      %32 = vsyncadd [#allocation6], 0
      %s33 = sshll.u32 %s1, 4
      %s34 = int_to_ptr.hbm [resolvable:$true] %s33
      %s35 = sshll.u32 [#allocation5], 4
      %s36 = int_to_ptr.vmem [resolvable:$true] %s35
      %41 = dma.hbm_to_vmem [thread:$0]  %s34, 2048, %s36, [#allocation6], 128, 128, 8
    $region9: #{tpu_custom_call.1} parent=1 // pred_fallthru
      _
    // Predicated region
    $region10: #{tpu_custom_call.1} parent=1 // pred_check
      _
    $region11: #{tpu_custom_call.1} parent=1 // pred_check_branch
      %43 = sbr.rel (0) target = $region13
    $region12: #{tpu_custom_call.1} parent=1 // pred_region
      _
    $region13: #{tpu_custom_call.1} parent=1 // pred_fallthru
      _
    // Predicated region
    $region14: #{tpu_custom_call.1} parent=1 // pred_check
      _
    $region15: #{tpu_custom_call.1} parent=1 // pred_check_branch
      %45 = sbr.rel (0) target = $region17
    $region16: #{tpu_custom_call.1} parent=1 // pred_region
      %47 = vsyncadd [#allocation6], 0
      %s48 = sshll.u32 %s3, 4
      %s49 = int_to_ptr.hbm [resolvable:$true] %s48
      %s50 = sshll.u32 [#allocation7], 4
      %s51 = int_to_ptr.vmem [resolvable:$true] %s50
      %56 = dma.hbm_to_vmem [thread:$0]  %s49, 2048, %s51, [#allocation6], 128, 128, 8
    $region17: #{tpu_custom_call.1} parent=1 // pred_fallthru
      _
    // Predicated region
    $region18: #{tpu_custom_call.1} parent=1 // pred_check
      _
    $region19: #{tpu_custom_call.1} parent=1 // pred_check_branch
      %58 = sbr.rel (0) target = $region21
    $region20: #{tpu_custom_call.1} parent=1 // pred_region
      _
    $region21: #{tpu_custom_call.1} parent=1 // pred_fallthru
      _
    // Predicated region
    $region22: #{tpu_custom_call.1} parent=1 // pred_check
      _
    $region23: #{tpu_custom_call.1} parent=1 // pred_check_branch
      %60 = sbr.rel (0) target = $region25
    $region24: #{tpu_custom_call.1} parent=1 // pred_region
      %62 = vsyncadd [#allocation9], 0
      %s63 = sshll.u32 %s5, 4
      %s64 = int_to_ptr.hbm [resolvable:$true] %s63
      %s65 = sshll.u32 [#allocation8], 4
      %s66 = int_to_ptr.vmem [resolvable:$true] %s65
      %71 = dma.hbm_to_vmem [thread:$0]  %s64, 2048, %s66, [#allocation9], 128, 128, 8
    $region25: #{tpu_custom_call.1} parent=1 // pred_fallthru
      _
    // Predicated region
    $region26: #{tpu_custom_call.1} parent=1 // pred_check
      _
    $region27: #{tpu_custom_call.1} parent=1 // pred_check_branch
      %73 = sbr.rel (0) target = $region29
    $region28: #{tpu_custom_call.1} parent=1 // pred_region
      _
    $region29: #{tpu_custom_call.1} parent=1 // pred_fallthru
      _
    // Predicated region
    $region30: #{tpu_custom_call.1} parent=1 // pred_check
      _
    $region31: #{tpu_custom_call.1} parent=1 // pred_check_branch
      %75 = sbr.rel (0) target = $region33
    $region32: #{tpu_custom_call.1} parent=1 // pred_region
      %77 = dma.done [#allocation3], 1024
    $region33: #{tpu_custom_call.1} parent=1 // pred_fallthru
      _
    // Predicated region
    $region34: #{tpu_custom_call.1} parent=1 // pred_check
      _
    $region35: #{tpu_custom_call.1} parent=1 // pred_check_branch
      %79 = sbr.rel (0) target = $region37
    $region36: #{tpu_custom_call.1} parent=1 // pred_region
      %81 = dma.done [#allocation6], 2048
    $region37: #{tpu_custom_call.1} parent=1 // pred_fallthru
      _
    // Predicated region
    $region38: #{tpu_custom_call.1} parent=1 // pred_check
      _
    $region39: #{tpu_custom_call.1} parent=1 // pred_check_branch
      %83 = sbr.rel (0) target = $region41
    $region40: #{tpu_custom_call.1} parent=1 // pred_region
      %85 = dma.done [#allocation6], 2048
    $region41: #{tpu_custom_call.1} parent=1 // pred_fallthru
      _
    // Predicated region
    $region42: #{tpu_custom_call.1} parent=1 // pred_check
      _
    $region43: #{tpu_custom_call.1} parent=1 // pred_check_branch
      %87 = sbr.rel (0) target = $region45
    $region44: #{tpu_custom_call.1} parent=1 // pred_region
      %89 = dma.done [#allocation9], 2048
    $region45: #{tpu_custom_call.1} parent=1 // pred_fallthru
      _
    %v90 = vld [vmem:[#allocation2] sm:$0xff]
    %v91 = vld [vmem:[#allocation2 + $0x8] sm:$0xff]
    %v92 = vld [vmem:[#allocation2 + $0x10] sm:$0xff]
    %v93 = vld [vmem:[#allocation2 + $0x18] sm:$0xff]
    %v94 = vld [vmem:[#allocation2 + $0x20] sm:$0xff]
    %v95 = vld [vmem:[#allocation2 + $0x28] sm:$0xff]
    %v96 = vld [vmem:[#allocation2 + $0x30] sm:$0xff]
    %v97 = vld [vmem:[#allocation2 + $0x38] sm:$0xff]
    %v98 = vld [vmem:[#allocation5] sm:$0xff]
    %v99 = vld [vmem:[#allocation5 + $0x8] sm:$0xff]
    %v100 = vld [vmem:[#allocation5 + $0x10] sm:$0xff]
    %v101 = vld [vmem:[#allocation5 + $0x18] sm:$0xff]
    %v102 = vld [vmem:[#allocation5 + $0x20] sm:$0xff]
    %v103 = vld [vmem:[#allocation5 + $0x28] sm:$0xff]
    %v104 = vld [vmem:[#allocation5 + $0x30] sm:$0xff]
    %v105 = vld [vmem:[#allocation5 + $0x38] sm:$0xff]
    %v106 = vld [vmem:[#allocation5 + $0x40] sm:$0xff]
    %v107 = vld [vmem:[#allocation5 + $0x48] sm:$0xff]
    %v108 = vld [vmem:[#allocation5 + $0x50] sm:$0xff]
    %v109 = vld [vmem:[#allocation5 + $0x58] sm:$0xff]
    %v110 = vld [vmem:[#allocation5 + $0x60] sm:$0xff]
    %v111 = vld [vmem:[#allocation5 + $0x68] sm:$0xff]
    %v112 = vld [vmem:[#allocation5 + $0x70] sm:$0xff]
    %v113 = vld [vmem:[#allocation5 + $0x78] sm:$0xff]
    %v114 = vld [vmem:[%s2] sm:$0x1]
    %v116 = vperm.slane %v114, 0
    %118 = vmatpush.msra.mxu0 %v113
    %119 = vmatpush.msra.mxu0 %v112
    %120 = vmatpush.msra.mxu0 %v111
    %121 = vmatpush.msra.mxu0 %v110
    %122 = vmatpush.msra.mxu0 %v109
    %123 = vmatpush.msra.mxu0 %v108
    %124 = vmatpush.msra.mxu0 %v107
    %125 = vmatpush.msra.mxu0 %v106
    %126 = vmatpush.msra.mxu0 %v105
    %127 = vmatpush.msra.mxu0 %v104
    %128 = vmatpush.msra.mxu0 %v103
    %129 = vmatpush.msra.mxu0 %v102
    %130 = vmatpush.msra.mxu0 %v101
    %131 = vmatpush.msra.mxu0 %v100
    %132 = vmatpush.msra.mxu0 %v99
    %133 = vmatpush.msra.mxu0 %v98
    %134 = vmatmul.f32.gmra.mxu0 %v90
    %v135 = vpop.f32.mrf.mxu0
    %v136 = vadd.f32 %v116, %v135
    %137 = vmatmul.f32.gmra.mxu0 %v91
    %v138 = vpop.f32.mrf.mxu0
    %v139 = vadd.f32 %v116, %v138
    %140 = vmatmul.f32.gmra.mxu0 %v92
    %v141 = vpop.f32.mrf.mxu0
    %v142 = vadd.f32 %v116, %v141
    %143 = vmatmul.f32.gmra.mxu0 %v93
    %v144 = vpop.f32.mrf.mxu0
    %v145 = vadd.f32 %v116, %v144
    %146 = vmatmul.f32.gmra.mxu0 %v94
    %v147 = vpop.f32.mrf.mxu0
    %v148 = vadd.f32 %v116, %v147
    %149 = vmatmul.f32.gmra.mxu0 %v95
    %v150 = vpop.f32.mrf.mxu0
    %v151 = vadd.f32 %v116, %v150
    %152 = vmatmul.f32.gmra.mxu0 %v96
    %v153 = vpop.f32.mrf.mxu0
    %v154 = vadd.f32 %v116, %v153
    %155 = vmatmul.f32.gmra.mxu0 %v97
    %v156 = vpop.f32.mrf.mxu0
    %v157 = vadd.f32 %v116, %v156
    %158 = vdwg.mxu0
    %v159 = vmax.f32 %v136, 0.0
    %v160 = vmax.f32 %v139, 0.0
    %v161 = vmax.f32 %v142, 0.0
    %v162 = vmax.f32 %v145, 0.0
    %v163 = vmax.f32 %v148, 0.0
    %v164 = vmax.f32 %v151, 0.0
    %v165 = vmax.f32 %v154, 0.0
    %v166 = vmax.f32 %v157, 0.0
    %v167 = vld [vmem:[#allocation7] sm:$0xff]
    %v168 = vld [vmem:[#allocation7 + $0x8] sm:$0xff]
    %v169 = vld [vmem:[#allocation7 + $0x10] sm:$0xff]
    %v170 = vld [vmem:[#allocation7 + $0x18] sm:$0xff]
    %v171 = vld [vmem:[#allocation7 + $0x20] sm:$0xff]
    %v172 = vld [vmem:[#allocation7 + $0x28] sm:$0xff]
    %v173 = vld [vmem:[#allocation7 + $0x30] sm:$0xff]
    %v174 = vld [vmem:[#allocation7 + $0x38] sm:$0xff]
    %v175 = vld [vmem:[#allocation7 + $0x40] sm:$0xff]
    %v176 = vld [vmem:[#allocation7 + $0x48] sm:$0xff]
    %v177 = vld [vmem:[#allocation7 + $0x50] sm:$0xff]
    %v178 = vld [vmem:[#allocation7 + $0x58] sm:$0xff]
    %v179 = vld [vmem:[#allocation7 + $0x60] sm:$0xff]
    %v180 = vld [vmem:[#allocation7 + $0x68] sm:$0xff]
    %v181 = vld [vmem:[#allocation7 + $0x70] sm:$0xff]
    %v182 = vld [vmem:[#allocation7 + $0x78] sm:$0xff]
    %v183 = vld [vmem:[%s4] sm:$0x1]
    %v185 = vperm.slane %v183, 0
    %187 = vmatpush.msra.mxu0 %v182
    %188 = vmatpush.msra.mxu0 %v181
    %189 = vmatpush.msra.mxu0 %v180
    %190 = vmatpush.msra.mxu0 %v179
    %191 = vmatpush.msra.mxu0 %v178
    %192 = vmatpush.msra.mxu0 %v177
    %193 = vmatpush.msra.mxu0 %v176
    %194 = vmatpush.msra.mxu0 %v175
    %195 = vmatpush.msra.mxu0 %v174
    %196 = vmatpush.msra.mxu0 %v173
    %197 = vmatpush.msra.mxu0 %v172
    %198 = vmatpush.msra.mxu0 %v171
    %199 = vmatpush.msra.mxu0 %v170
    %200 = vmatpush.msra.mxu0 %v169
    %201 = vmatpush.msra.mxu0 %v168
    %202 = vmatpush.msra.mxu0 %v167
    %203 = vmatmul.f32.gmra.mxu0 %v159
    %v204 = vpop.f32.mrf.mxu0
    %v205 = vadd.f32 %v185, %v204
    %206 = vmatmul.f32.gmra.mxu0 %v160
    %v207 = vpop.f32.mrf.mxu0
    %v208 = vadd.f32 %v185, %v207
    %209 = vmatmul.f32.gmra.mxu0 %v161
    %v210 = vpop.f32.mrf.mxu0
    %v211 = vadd.f32 %v185, %v210
    %212 = vmatmul.f32.gmra.mxu0 %v162
    %v213 = vpop.f32.mrf.mxu0
    %v214 = vadd.f32 %v185, %v213
    %215 = vmatmul.f32.gmra.mxu0 %v163
    %v216 = vpop.f32.mrf.mxu0
    %v217 = vadd.f32 %v185, %v216
    %218 = vmatmul.f32.gmra.mxu0 %v164
    %v219 = vpop.f32.mrf.mxu0
    %v220 = vadd.f32 %v185, %v219
    %221 = vmatmul.f32.gmra.mxu0 %v165
    %v222 = vpop.f32.mrf.mxu0
    %v223 = vadd.f32 %v185, %v222
    %224 = vmatmul.f32.gmra.mxu0 %v166
    %v225 = vpop.f32.mrf.mxu0
    %v226 = vadd.f32 %v185, %v225
    %227 = vdwg.mxu0
    %v228 = vmax.f32 %v205, 0.0
    %v229 = vmax.f32 %v208, 0.0
    %v230 = vmax.f32 %v211, 0.0
    %v231 = vmax.f32 %v214, 0.0
    %v232 = vmax.f32 %v217, 0.0
    %v233 = vmax.f32 %v220, 0.0
    %v234 = vmax.f32 %v223, 0.0
    %v235 = vmax.f32 %v226, 0.0
    %v236 = vld [vmem:[#allocation8] sm:$0xff]
    %v237 = vld [vmem:[#allocation8 + $0x8] sm:$0xff]
    %v238 = vld [vmem:[#allocation8 + $0x10] sm:$0xff]
    %v239 = vld [vmem:[#allocation8 + $0x18] sm:$0xff]
    %v240 = vld [vmem:[#allocation8 + $0x20] sm:$0xff]
    %v241 = vld [vmem:[#allocation8 + $0x28] sm:$0xff]
    %v242 = vld [vmem:[#allocation8 + $0x30] sm:$0xff]
    %v243 = vld [vmem:[#allocation8 + $0x38] sm:$0xff]
    %v244 = vld [vmem:[#allocation8 + $0x40] sm:$0xff]
    %v245 = vld [vmem:[#allocation8 + $0x48] sm:$0xff]
    %v246 = vld [vmem:[#allocation8 + $0x50] sm:$0xff]
    %v247 = vld [vmem:[#allocation8 + $0x58] sm:$0xff]
    %v248 = vld [vmem:[#allocation8 + $0x60] sm:$0xff]
    %v249 = vld [vmem:[#allocation8 + $0x68] sm:$0xff]
    %v250 = vld [vmem:[#allocation8 + $0x70] sm:$0xff]
    %v251 = vld [vmem:[#allocation8 + $0x78] sm:$0xff]
    %v252 = vld [vmem:[%s6] sm:$0x1]
    %v254 = vperm.slane %v252, 0
    %256 = vmatpush.msra.mxu0 %v251
    %257 = vmatpush.msra.mxu0 %v250
    %258 = vmatpush.msra.mxu0 %v249
    %259 = vmatpush.msra.mxu0 %v248
    %260 = vmatpush.msra.mxu0 %v247
    %261 = vmatpush.msra.mxu0 %v246
    %262 = vmatpush.msra.mxu0 %v245
    %263 = vmatpush.msra.mxu0 %v244
    %264 = vmatpush.msra.mxu0 %v243
    %265 = vmatpush.msra.mxu0 %v242
    %266 = vmatpush.msra.mxu0 %v241
    %267 = vmatpush.msra.mxu0 %v240
    %268 = vmatpush.msra.mxu0 %v239
    %269 = vmatpush.msra.mxu0 %v238
    %270 = vmatpush.msra.mxu0 %v237
    %271 = vmatpush.msra.mxu0 %v236
    %272 = vmatmul.f32.gmra.mxu0 %v228
    %v273 = vpop.f32.mrf.mxu0
    %v274 = vadd.f32 %v254, %v273
    %275 = vmatmul.f32.gmra.mxu0 %v229
    %v276 = vpop.f32.mrf.mxu0
    %v277 = vadd.f32 %v254, %v276
    %278 = vmatmul.f32.gmra.mxu0 %v230
    %v279 = vpop.f32.mrf.mxu0
    %v280 = vadd.f32 %v254, %v279
    %281 = vmatmul.f32.gmra.mxu0 %v231
    %v282 = vpop.f32.mrf.mxu0
    %v283 = vadd.f32 %v254, %v282
    %284 = vmatmul.f32.gmra.mxu0 %v232
    %v285 = vpop.f32.mrf.mxu0
    %v286 = vadd.f32 %v254, %v285
    %287 = vmatmul.f32.gmra.mxu0 %v233
    %v288 = vpop.f32.mrf.mxu0
    %v289 = vadd.f32 %v254, %v288
    %290 = vmatmul.f32.gmra.mxu0 %v234
    %v291 = vpop.f32.mrf.mxu0
    %v292 = vadd.f32 %v254, %v291
    %293 = vmatmul.f32.gmra.mxu0 %v235
    %v294 = vpop.f32.mrf.mxu0
    %v295 = vadd.f32 %v254, %v294
    %296 = vdwg.mxu0
    %297 = vst [vmem:[#allocation10] sm:$0xff] %v274
    %298 = vst [vmem:[#allocation10 + $0x8] sm:$0xff] %v277
    %299 = vst [vmem:[#allocation10 + $0x10] sm:$0xff] %v280
    %300 = vst [vmem:[#allocation10 + $0x18] sm:$0xff] %v283
    %301 = vst [vmem:[#allocation10 + $0x20] sm:$0xff] %v286
    %302 = vst [vmem:[#allocation10 + $0x28] sm:$0xff] %v289
    %303 = vst [vmem:[#allocation10 + $0x30] sm:$0xff] %v292
    %304 = vst [vmem:[#allocation10 + $0x38] sm:$0xff] %v295
    // Predicated region
    $region46: #{tpu_custom_call.1} parent=1 // pred_check
      _
    $region47: #{tpu_custom_call.1} parent=1 // pred_check_branch
      %306 = sbr.rel (0) target = $region49
    $region48: #{tpu_custom_call.1} parent=1 // pred_region
      %308 = vsyncadd [#allocation4], 0
      %s309 = sshll.u32 [#allocation10], 4
      %s310 = int_to_ptr.vmem [resolvable:$true] %s309
      %s311 = sshll.u32 %s7, 4
      %s312 = int_to_ptr.hbm [resolvable:$true] %s311
      %317 = dma.vmem_to_hbm [thread:$0]  %s310, 1024, %s312, [#allocation4], 128, 128, 8
    $region49: #{tpu_custom_call.1} parent=1 // pred_fallthru
      _
    // Predicated region
    $region50: #{tpu_custom_call.1} parent=1 // pred_check
      _
    $region51: #{tpu_custom_call.1} parent=1 // pred_check_branch
      %319 = sbr.rel (0) target = $region53
    $region52: #{tpu_custom_call.1} parent=1 // pred_region
      %321 = dma.done [#allocation4], 1024
    $region53: #{tpu_custom_call.1} parent=1 // pred_fallthru
      _
    %322 = vsyncpa [#allocation3], 1
    %323 = vsyncpa [#allocation6], 1
    %324 = vsyncpa [#allocation9], 1
    %325 = vsyncpa [#allocation4], 1

</llo_original>
